<compile_context>
chip_gen: v7x
topology: tpu7x:2x2x1
jax: 0.10.0
libtpu: 0.0.40
codegen_flags: <defaults>
</compile_context>

<pallas_src>
import functools

import jax
import jax.numpy as jnp
from jax.experimental import pallas as pl
from jax.experimental.pallas import tpu as pltpu


def _adain_kernel(x_ref, y_ref, o_ref, *, eps: float, hw: int):
    # Block shape is (TM, HW_pad): TM full (batch, channel) planes per grid
    # step, one plane per row.  All statistics are per-row reductions
    # (axis=-1), so padded lanes (zeros) and padded/garbage rows in a partial
    # final block cannot contaminate valid rows.
    f32 = jnp.float32
    inv_hw = f32(1.0 / hw)
    inv_hwm1 = f32(1.0 / (hw - 1))
    eps_f = f32(eps)

    def row_stats(ref):
        v = ref[...].astype(f32)
        s = jnp.sum(v, axis=-1, keepdims=True)          # sum
        ss = jnp.sum(v * v, axis=-1, keepdims=True)     # sum of squares
        mu = s * inv_hw
        # Unbiased variance via single pass; zero-padding contributes nothing
        # because we divide by the true hw.  Clamp tiny negatives from
        # cancellation.
        var = (ss - s * mu) * inv_hwm1
        sigma = jnp.sqrt(jnp.maximum(var, 0.0)) + eps_f   # eps AFTER sqrt (torch)
        return mu, sigma

    mu_x, sigma_x = row_stats(x_ref)
    mu_y, sigma_y = row_stats(y_ref)

    # Per-plane scale/shift: one exact divide per plane (do NOT use
    # pl.reciprocal(approx=True) here -- it feeds every output element).
    scale = sigma_y / sigma_x
    shift = mu_y - mu_x * scale

    if o_ref.dtype == jnp.float32:
        o_ref[...] = x_ref[...].astype(f32) * scale + shift
    else:
        # 16-bit storage: do the element-wise FMA in the storage dtype
        # (halves vld/VALU width on the output sweep); stats stayed in f32.
        o_ref[...] = (x_ref[...] * scale.astype(o_ref.dtype)
                      + shift.astype(o_ref.dtype))


def _tpu_generation_params():
    """Returns (target block bytes per operand, vmem-limit cap, small_vmem)."""
    try:
        info = pltpu.get_tpu_info()
        vmem_capacity = int(getattr(info, "vmem_capacity_bytes",
                                    64 * 1024 * 1024))
    except Exception:
        vmem_capacity = 64 * 1024 * 1024  # conservative (v7x-sized) default
    if vmem_capacity >= 96 * 1024 * 1024:
        # v5e / v6e: 128 MiB VMEM -> bigger blocks, higher scoped-VMEM limit.
        return 6 * 1024 * 1024, 96 * 1024 * 1024, False
    # v7x (or unknown): 64 MiB VMEM -> moderate blocks, keep 48 MiB cap.
    return 3 * 1024 * 1024, 48 * 1024 * 1024, True


def _pick_tm(rows: int, row_bytes: int, sublane: int,
             target_block_bytes: int) -> int:
    """Rows-per-step: sublane-aligned, byte-budgeted, >=2 grid steps when
    possible, preferring a divisor of rows (no ragged final block)."""
    if rows <= sublane:
        return rows  # full extent along rows is always a legal block dim
    # Largest sublane multiple whose per-operand block fits the byte budget.
    tm = max(sublane,
             (target_block_bytes // max(row_bytes, 1)) // sublane * sublane)
    # Keep the grid at >= 2 steps so ("parallel",) can shard across v7x's two
    # TensorCores (harmless on single-TC v5e/v6e).
    tm = min(tm, max(sublane, (rows // 2) // sublane * sublane))
    # Prefer a tm that divides rows evenly, but don't shrink below half the
    # byte-budget tile (keep DMAs large).
    for cand in range(tm, max(sublane, tm // 2) - 1, -sublane):
        if rows % cand == 0:
            return cand
    return tm


def _block_spec(tm: int, hw_pad: int, buffers: int) -> pl.BlockSpec:
    if buffers > 2:
        try:
            return pl.BlockSpec((tm, hw_pad), lambda i: (i, 0),
                                pipeline_mode=pl.Buffered(buffers))
        except Exception:
            pass  # older jax without pipeline_mode: default double buffering
    return pl.BlockSpec((tm, hw_pad), lambda i: (i, 0))


def adain(x: jax.Array, y: jax.Array, eps: float = 1e-5) -> jax.Array:
    """AdaIN forward. x, y: (N, C, H, W), same shape."""
    assert x.shape == y.shape, "x and y must have the same shape"
    n, c, h, w = x.shape
    rows, hw = n * c, h * w
    assert hw > 1, "unbiased std needs H*W > 1"

    # Lane-dense 2D view: one row per (batch, channel) plane.
    x2 = x.reshape(rows, hw)
    y2 = y.reshape(rows, hw)

    # Pad lane axis to a multiple of 128 (unmasked stores, aligned lane
    # reductions).  Zero padding is invisible to the single-pass statistics.
    hw_pad = ((hw + 127) // 128) * 128
    if hw_pad != hw:
        pad = ((0, 0), (0, hw_pad - hw))
        x2 = jnp.pad(x2, pad)
        y2 = jnp.pad(y2, pad)

    itemsize = jnp.dtype(x.dtype).itemsize
    sublane = {4: 8, 2: 16, 1: 32}.get(itemsize, 8)
    row_bytes = hw_pad * itemsize

    target_block_bytes, vmem_cap, small_vmem = _tpu_generation_params()
    tm = _pick_tm(rows, row_bytes, sublane, target_block_bytes)
    block_bytes = tm * row_bytes
    num_steps = pl.cdiv(rows, tm)

    # Optional third input buffer on v7x-class parts when the pipeline is long
    # enough and the extra buffers fit comfortably in the VMEM budget.
    in_bufs = 2
    if (small_vmem and num_steps >= 3
            and (2 * 3 + 2) * block_bytes + 16 * 1024 * 1024 <= vmem_cap):
        in_bufs = 3

    # 2 inputs x in_bufs + output x 2 buffers, plus headroom for f32 temps.
    vmem_limit = int(min(vmem_cap,
                         max((2 * in_bufs + 2 + 6) * block_bytes,
                             32 * 1024 * 1024)))

    in_spec = _block_spec(tm, hw_pad, in_bufs)
    out_spec = _block_spec(tm, hw_pad, 2)

    out2 = pl.pallas_call(
        functools.partial(_adain_kernel, eps=eps, hw=hw),
        out_shape=jax.ShapeDtypeStruct((rows, hw_pad), x.dtype),
        grid_spec=pltpu.PrefetchScalarGridSpec(
            num_scalar_prefetch=0,
            grid=(num_steps,),
            in_specs=[in_spec, in_spec],
            out_specs=out_spec,
        ),
        compiler_params=pltpu.CompilerParams(
            dimension_semantics=("parallel",),
            vmem_limit_bytes=vmem_limit,
        ),
    )(x2, y2)

    if hw_pad != hw:
        out2 = out2[:, :hw]
    return out2.reshape(n, c, h, w)


def adain_ref(x, y, eps=1e-5):
    """Pure-JAX reference mirroring the PyTorch module."""
    mu_x = jnp.mean(x, axis=(2, 3), keepdims=True)
    mu_y = jnp.mean(y, axis=(2, 3), keepdims=True)
    sigma_x = jnp.std(x, axis=(2, 3), keepdims=True, ddof=1) + eps
    sigma_y = jnp.std(y, axis=(2, 3), keepdims=True, ddof=1) + eps
    return (x - mu_x) / sigma_x * sigma_y + mu_y


if __name__ == "__main__":
    key = jax.random.PRNGKey(0)
    kx, ky = jax.random.split(key)

    # Case 1: aligned spatial (H*W = 256, multiple of 128), rows = 8.
    n, c, h, w = 2, 4, 16, 16
    x = jax.random.normal(kx, (n, c, h, w), dtype=jnp.float32)
    y = jax.random.normal(ky, (n, c, h, w), dtype=jnp.float32) * 2.0 + 0.5

    out = adain(x, y)
    jax.block_until_ready(out)
    ref = adain_ref(x, y)
    assert out.shape == x.shape
    assert jnp.allclose(out, ref, atol=1e-5, rtol=1e-5), "mismatch vs reference"

    # Case 2: ragged — H*W = 196 (not a multiple of 128, exercises lane
    # padding) and rows = 15 (not a multiple of tm, exercises partial block).
    kx2, ky2 = jax.random.split(ky)
    n2, c2, h2, w2 = 3, 5, 14, 14
    x2 = jax.random.normal(kx2, (n2, c2, h2, w2), dtype=jnp.float32)
    y2 = jax.random.normal(ky2, (n2, c2, h2, w2), dtype=jnp.float32) * 0.7 + 0.3

    out2 = adain(x2, y2)
    jax.block_until_ready(out2)
    ref2 = adain_ref(x2, y2)
    assert out2.shape == x2.shape
    assert jnp.allclose(out2, ref2, atol=1e-5, rtol=1e-5), "ragged mismatch"

    print("KERNEL_OK")
</pallas_src>

<mosaic_0001>
module attributes {stable_mosaic.version = 11 : i64} {
  func.func @_adain_kernel(%arg0: i32, %arg1: memref<8x256xf32, #tpu.memory_space<vmem>>, %arg2: memref<8x256xf32, #tpu.memory_space<vmem>>, %arg3: memref<8x256xf32, #tpu.memory_space<vmem>>) attributes {dimension_semantics = [#tpu.dimension_semantics<parallel>], iteration_bounds = array<i64: 1>, scalar_prefetch = 0 : i64, scratch_operands = 0 : i64, tpu.core_type = #tpu.core_type<tc>, window_params = [{transform_indices = @transform_0, window_bounds = array<i64: 8, 256>}, {transform_indices = @transform_1, window_bounds = array<i64: 8, 256>}, {transform_indices = @transform_2, window_bounds = array<i64: 8, 256>}]} {
    %c0 = arith.constant 0 : index
    %c0_0 = arith.constant 0 : index
    %0 = vector.load %arg1[%c0, %c0_0] : memref<8x256xf32, #tpu.memory_space<vmem>>, vector<8x256xf32>
    %cst = arith.constant dense<0.000000e+00> : vector<8xf32>
    %1 = vector.multi_reduction <add>, %0, %cst [1] : vector<8x256xf32> to vector<8xf32>
    %2 = vector.shape_cast %1 : vector<8xf32> to vector<8x1xf32>
    %3 = arith.mulf %0, %0 : vector<8x256xf32>
    %cst_1 = arith.constant dense<0.000000e+00> : vector<8xf32>
    %4 = vector.multi_reduction <add>, %3, %cst_1 [1] : vector<8x256xf32> to vector<8xf32>
    %5 = vector.shape_cast %4 : vector<8xf32> to vector<8x1xf32>
    %cst_2 = arith.constant 3.906250e-03 : f32
    %6 = vector.broadcast %cst_2 : f32 to vector<8x1xf32>
    %7 = arith.mulf %2, %6 : vector<8x1xf32>
    %8 = arith.mulf %2, %7 : vector<8x1xf32>
    %9 = arith.subf %5, %8 : vector<8x1xf32>
    %cst_3 = arith.constant 0.00392156886 : f32
    %10 = vector.broadcast %cst_3 : f32 to vector<8x1xf32>
    %11 = arith.mulf %9, %10 : vector<8x1xf32>
    %cst_4 = arith.constant 0.000000e+00 : f32
    %12 = vector.broadcast %cst_4 : f32 to vector<8x1xf32>
    %13 = arith.maximumf %11, %12 : vector<8x1xf32>
    %14 = math.sqrt %13 : vector<8x1xf32>
    %cst_5 = arith.constant 9.99999974E-6 : f32
    %15 = vector.broadcast %cst_5 : f32 to vector<8x1xf32>
    %16 = arith.addf %14, %15 : vector<8x1xf32>
    %c0_6 = arith.constant 0 : index
    %c0_7 = arith.constant 0 : index
    %17 = vector.load %arg2[%c0_6, %c0_7] : memref<8x256xf32, #tpu.memory_space<vmem>>, vector<8x256xf32>
    %cst_8 = arith.constant dense<0.000000e+00> : vector<8xf32>
    %18 = vector.multi_reduction <add>, %17, %cst_8 [1] : vector<8x256xf32> to vector<8xf32>
    %19 = vector.shape_cast %18 : vector<8xf32> to vector<8x1xf32>
    %20 = arith.mulf %17, %17 : vector<8x256xf32>
    %cst_9 = arith.constant dense<0.000000e+00> : vector<8xf32>
    %21 = vector.multi_reduction <add>, %20, %cst_9 [1] : vector<8x256xf32> to vector<8xf32>
    %22 = vector.shape_cast %21 : vector<8xf32> to vector<8x1xf32>
    %cst_10 = arith.constant 3.906250e-03 : f32
    %23 = vector.broadcast %cst_10 : f32 to vector<8x1xf32>
    %24 = arith.mulf %19, %23 : vector<8x1xf32>
    %25 = arith.mulf %19, %24 : vector<8x1xf32>
    %26 = arith.subf %22, %25 : vector<8x1xf32>
    %cst_11 = arith.constant 0.00392156886 : f32
    %27 = vector.broadcast %cst_11 : f32 to vector<8x1xf32>
    %28 = arith.mulf %26, %27 : vector<8x1xf32>
    %cst_12 = arith.constant 0.000000e+00 : f32
    %29 = vector.broadcast %cst_12 : f32 to vector<8x1xf32>
    %30 = arith.maximumf %28, %29 : vector<8x1xf32>
    %31 = math.sqrt %30 : vector<8x1xf32>
    %cst_13 = arith.constant 9.99999974E-6 : f32
    %32 = vector.broadcast %cst_13 : f32 to vector<8x1xf32>
    %33 = arith.addf %31, %32 : vector<8x1xf32>
    %34 = arith.divf %33, %16 : vector<8x1xf32>
    %35 = arith.mulf %7, %34 : vector<8x1xf32>
    %36 = arith.subf %24, %35 : vector<8x1xf32>
    %c0_14 = arith.constant 0 : index
    %c0_15 = arith.constant 0 : index
    %37 = vector.load %arg1[%c0_14, %c0_15] : memref<8x256xf32, #tpu.memory_space<vmem>>, vector<8x256xf32>
    %38 = vector.broadcast %34 : vector<8x1xf32> to vector<8x256xf32>
    %39 = arith.mulf %37, %38 : vector<8x256xf32>
    %40 = vector.broadcast %36 : vector<8x1xf32> to vector<8x256xf32>
    %41 = arith.addf %39, %40 : vector<8x256xf32>
    %c0_16 = arith.constant 0 : index
    %c0_17 = arith.constant 0 : index
    %42 = vector.load %arg3[%c0_16, %c0_17] : memref<8x256xf32, #tpu.memory_space<vmem>>, vector<8x256xf32>
    tpu.vector_store %arg3[%c0_16, %c0_17], %41 {strides = array<i32>} : memref<8x256xf32, #tpu.memory_space<vmem>>, vector<8x256xf32>,
    return
  }
  func.func @transform_0(%arg0: i32) -> (i32, i32) {
    %c0_i32 = arith.constant 0 : i32
    %c0_i32_0 = arith.constant 0 : i32
    return %arg0, %c0_i32 : i32, i32
  }
  func.func @transform_1(%arg0: i32) -> (i32, i32) {
    %c0_i32 = arith.constant 0 : i32
    %c0_i32_0 = arith.constant 0 : i32
    return %arg0, %c0_i32 : i32, i32
  }
  func.func @transform_2(%arg0: i32) -> (i32, i32) {
    %c0_i32 = arith.constant 0 : i32
    %c0_i32_0 = arith.constant 0 : i32
    return %arg0, %c0_i32 : i32, i32
  }
}

</mosaic_0001>

<llo_original>
// kernel: tpu_custom_call.1
$region0: #{tpu_custom_call.1}
  #allocation0 [shape = 'u32[]', space=smem, size = 0x4, offset = 0x4, fixed_abs, tag = 'smem constant byte address 0x4 - core index']
  #allocation1 [shape = 'u32[144,128]{1,0:T(1,128)}', space=vmem, size = 0x12000, scoped, tag = 'internal scratch']
  %s0 = inlined_call_operand.hbm [shape: f32[8,256], index: 0, kind: input, shape index: {}]
  %s1 = inlined_call_operand.hbm [shape: f32[8,256], index: 1, kind: input, shape index: {}]
  %s2 = inlined_call_operand.hbm [shape: f32[8,256], index: 2, kind: output, shape index: {}]
  %s3 = sld [smem:[#allocation0]]
  $region26: #{tpu_custom_call.1} parent=0
    _
  %s5 = ssub.s32 1, %s3
  %s6 = scalar_select 0, %s5, %s3
  $region1: #{tpu_custom_call.1} parent=0
    #allocation2 [shape = 'u8[8192]{0}', space=vmem, size = 0x2000, scoped, tag = 'input window, operand 0, single buffered']
    #allocation3 [shape = 's32[1]{0}', space=sflag, size = 0x4, scoped, tag = 'scoped memory for tpu_custom_call.1']
    #allocation4 [shape = 's32[1]{0}', space=sflag, size = 0x4, scoped, tag = 'scoped memory for tpu_custom_call.1']
    #allocation5 [shape = 'u8[8192]{0}', space=vmem, size = 0x2000, scoped, tag = 'input window, operand 1, single buffered']
    #allocation6 [shape = 's32[1]{0}', space=sflag, size = 0x4, scoped, tag = 'scoped memory for tpu_custom_call.1']
    #allocation7 [shape = 'u8[8192]{0}', space=vmem, size = 0x2000, scoped, tag = 'output window, operand 0, single buffered']
    %7 = vsyncpa [#allocation3], 0
    %8 = vsyncpa [#allocation6], 0
    %9 = vsyncpa [#allocation4], 0
    // Predicated region
    $region2: #{tpu_custom_call.1} parent=1 // pred_check
      _
    $region3: #{tpu_custom_call.1} parent=1 // pred_check_branch
      %11 = sbr.rel (0) target = $region5
    $region4: #{tpu_custom_call.1} parent=1 // pred_region
      %s13 = ssub.s32 256, 256
      %14 = vsyncadd [#allocation3], %s13
      %s16 = sshll.u32 [#allocation2], 4
      %s17 = int_to_ptr.vmem [resolvable:$true] %s16
      %19 = dma.hbm_to_vmem [thread:$0]  %s0, 256, %s17, [#allocation3]
    $region5: #{tpu_custom_call.1} parent=1 // pred_fallthru
      _
    // Predicated region
    $region6: #{tpu_custom_call.1} parent=1 // pred_check
      _
    $region7: #{tpu_custom_call.1} parent=1 // pred_check_branch
      %21 = sbr.rel (0) target = $region9
    $region8: #{tpu_custom_call.1} parent=1 // pred_region
      %s23 = ssub.s32 256, 256
      %24 = vsyncadd [#allocation6], %s23
      %s26 = sshll.u32 [#allocation5], 4
      %s27 = int_to_ptr.vmem [resolvable:$true] %s26
      %29 = dma.hbm_to_vmem [thread:$0]  %s1, 256, %s27, [#allocation6]
    $region9: #{tpu_custom_call.1} parent=1 // pred_fallthru
      _
    // Predicated region
    $region10: #{tpu_custom_call.1} parent=1 // pred_check
      _
    $region11: #{tpu_custom_call.1} parent=1 // pred_check_branch
      %31 = sbr.rel (0) target = $region13
    $region12: #{tpu_custom_call.1} parent=1 // pred_region
      %32 = dma.done [#allocation3], 256
    $region13: #{tpu_custom_call.1} parent=1 // pred_fallthru
      _
    // Predicated region
    $region14: #{tpu_custom_call.1} parent=1 // pred_check
      _
    $region15: #{tpu_custom_call.1} parent=1 // pred_check_branch
      %34 = sbr.rel (0) target = $region17
    $region16: #{tpu_custom_call.1} parent=1 // pred_region
      %35 = dma.done [#allocation6], 256
    $region17: #{tpu_custom_call.1} parent=1 // pred_fallthru
      _
    %v36 = vld [vmem:[#allocation2] sm:$0xff]
    %v37 = vld [vmem:[#allocation2 + $0x8] sm:$0xff]
    %v38 = vadd.f32 %v36, %v37
    %39 = vadd.xlane.f32.xlu0 %v38
    %v40 = vpop.xlane.xlu0 %39
    %v41 = vmul.f32 %v36, %v36
    %v42 = vmul.f32 %v37, %v37
    %v43 = vadd.f32 %v41, %v42
    %44 = vadd.xlane.f32.xlu0 %v43
    %v45 = vpop.xlane.xlu0 %44
    %v46 = vmul.f32 %v40, 0.00390625
    %v47 = vmul.f32 %v40, %v46
    %v48 = vsub.f32 %v45, %v47
    %v49 = vmul.f32 %v48, 0.003921569
    %v50 = vmax.f32 %v49, 0.0
    %v51 = vrsqrt.pop %v50
    %v52 = vmul.f32 %v50, %v51
    %vm53 = vcmp.eq.f32.partialorder %v50, inf
    %v54 = vsel %vm53, %v50, %v52
    %vm55 = vcmp.eq.f32.partialorder %v50, 0.0
    %v56 = vand.u32 %v50, 2147483648
    %v57 = vsel %vm55, %v56, %v54
    %v58 = vadd.f32 %v57, 1e-05
    %v59 = vld [vmem:[#allocation5] sm:$0xff]
    %v60 = vld [vmem:[#allocation5 + $0x8] sm:$0xff]
    %v61 = vadd.f32 %v59, %v60
    %62 = vadd.xlane.f32.xlu0 %v61
    %v63 = vpop.xlane.xlu0 %62
    %v64 = vmul.f32 %v59, %v59
    %v65 = vmul.f32 %v60, %v60
    %v66 = vadd.f32 %v64, %v65
    %67 = vadd.xlane.f32.xlu0 %v66
    %v68 = vpop.xlane.xlu0 %67
    %v69 = vmul.f32 %v63, 0.00390625
    %v70 = vmul.f32 %v63, %v69
    %v71 = vsub.f32 %v68, %v70
    %v72 = vmul.f32 %v71, 0.003921569
    %v73 = vmax.f32 %v72, 0.0
    %v74 = vrsqrt.pop %v73
    %v75 = vmul.f32 %v73, %v74
    %vm76 = vcmp.eq.f32.partialorder %v73, inf
    %v77 = vsel %vm76, %v73, %v75
    %vm78 = vcmp.eq.f32.partialorder %v73, 0.0
    %v79 = vand.u32 %v73, 2147483648
    %v80 = vsel %vm78, %v79, %v77
    %v81 = vadd.f32 %v80, 1e-05
    %v82 = vrcp.pop %v58
    %v83 = vmul.f32 %v81, %v82
    %v84 = vmul.f32 %v46, %v83
    %v85 = vsub.f32 %v69, %v84
    %v86 = vmul.f32 %v36, %v83
    %v87 = vmul.f32 %v37, %v83
    %v88 = vadd.f32 %v86, %v85
    %v89 = vadd.f32 %v87, %v85
    %90 = vst [vmem:[#allocation7] sm:$0xff] %v88
    %91 = vst [vmem:[#allocation7 + $0x8] sm:$0xff] %v89
    // Predicated region
    $region18: #{tpu_custom_call.1} parent=1 // pred_check
      _
    $region19: #{tpu_custom_call.1} parent=1 // pred_check_branch
      %93 = sbr.rel (0) target = $region21
    $region20: #{tpu_custom_call.1} parent=1 // pred_region
      %s95 = ssub.s32 256, 256
      %96 = vsyncadd [#allocation4], %s95
      %s98 = sshll.u32 [#allocation7], 4
      %s99 = int_to_ptr.vmem [resolvable:$true] %s98
      %101 = dma.vmem_to_hbm [thread:$0]  %s99, 256, %s2, [#allocation4]
    $region21: #{tpu_custom_call.1} parent=1 // pred_fallthru
      _
    // Predicated region
    $region22: #{tpu_custom_call.1} parent=1 // pred_check
      _
    $region23: #{tpu_custom_call.1} parent=1 // pred_check_branch
      %103 = sbr.rel (0) target = $region25
    $region24: #{tpu_custom_call.1} parent=1 // pred_region
      %104 = dma.done [#allocation4], 256
    $region25: #{tpu_custom_call.1} parent=1 // pred_fallthru
      _
    %105 = vsyncpa [#allocation3], 1
    %106 = vsyncpa [#allocation6], 1
    %107 = vsyncpa [#allocation4], 1

</llo_original>
